<compile_context>
chip_gen: v7x
topology: tpu7x:2x2x1
jax: 0.10.0
libtpu: 0.0.40
codegen_flags: <defaults>
</compile_context>

<pallas_src>
import functools

import jax
import jax.numpy as jnp
from jax.experimental import pallas as pl
from jax.experimental.pallas import tpu as pltpu


def _round_up(x, m):
    return ((x + m - 1) // m) * m


def _mm_classifier_kernel(img_ref, txt_ref, wi_ref, wt_ref, b_ref, out_ref, *,
                          num_classes):
    # img_ref: (TB, image_dim) f32      txt_ref: (TB, text_dim) f32
    # wi_ref:  (C_pad, image_dim) bf16  wt_ref:  (C_pad, text_dim) bf16
    # b_ref:   (1, C_pad) f32           out_ref: (TB, num_classes) f32
    dn = (((1,), (1,)), ((), ()))  # contract fan_in of x with fan_in of W  (x @ W^T)
    img = img_ref[...].astype(wi_ref.dtype)
    txt = txt_ref[...].astype(wt_ref.dtype)
    acc = jax.lax.dot_general(img, wi_ref[...], dn,
                              preferred_element_type=jnp.float32)
    acc = acc + jax.lax.dot_general(txt, wt_ref[...], dn,
                                    preferred_element_type=jnp.float32)
    acc = acc + b_ref[...]  # (1, C_pad) broadcasts over rows
    out_ref[...] = acc[:, :num_classes].astype(out_ref.dtype)


def prepare_classifier_params(weight, bias, *, image_dim,
                              weight_dtype=jnp.bfloat16):
    """One-time packing of nn.Linear params (do at init time, not per call).

    weight: (num_classes, fan_in) f32 (PyTorch nn.Linear layout)
    bias:   (num_classes,) f32
    Returns (w_img, w_txt, b_packed, num_classes) with classes padded to a
    multiple of 8 sublanes and fan_in kept lane-dense on the last axis.
    """
    num_classes, fan_in = weight.shape
    assert image_dim < fan_in
    c_pad = _round_up(max(num_classes, 1), 8)            # 14 -> 16 sublanes
    pad_c = c_pad - num_classes
    w = jnp.pad(weight, ((0, pad_c), (0, 0)))            # (C_pad, fan_in), zero rows
    w_img = w[:, :image_dim].astype(weight_dtype)        # (C_pad, image_dim)
    w_txt = w[:, image_dim:].astype(weight_dtype)        # (C_pad, text_dim)
    b_packed = jnp.pad(bias, (0, pad_c)).reshape(1, c_pad).astype(jnp.float32)
    return w_img, w_txt, b_packed, num_classes


def multimodal_classifier(image_emb, text_emb, params, *, batch_tile=512):
    """Forward of MultimodalClassifier: concat(image, text) @ W^T + b."""
    w_img, w_txt, b_packed, num_classes = params
    B, image_dim = image_emb.shape
    _, text_dim = text_emb.shape
    c_pad = w_img.shape[0]
    assert w_img.shape[1] == image_dim and w_txt.shape[1] == text_dim

    kernel = functools.partial(_mm_classifier_kernel, num_classes=num_classes)
    out_shape = jax.ShapeDtypeStruct((B, num_classes), jnp.float32)

    if B <= batch_tile:
        # Tiny-batch path: gridless, all operands resident in VMEM, one block.
        return pl.pallas_call(
            kernel,
            out_shape=out_shape,
            in_specs=[pl.BlockSpec(memory_space=pltpu.MemorySpace.VMEM)] * 5,
            out_specs=pl.BlockSpec(memory_space=pltpu.MemorySpace.VMEM),
        )(image_emb, text_emb, w_img, w_txt, b_packed)

    # Large-batch path: tile rows, keep weights/bias resident across the grid,
    # mark the batch axis parallel (megacore split on v7x, pipelined DMAs).
    tb = batch_tile
    grid = (pl.cdiv(B, tb),)
    return pl.pallas_call(
        kernel,
        out_shape=out_shape,
        grid_spec=pltpu.PrefetchScalarGridSpec(
            num_scalar_prefetch=0,
            grid=grid,
            in_specs=[
                pl.BlockSpec((tb, image_dim), lambda i: (i, 0)),
                pl.BlockSpec((tb, text_dim), lambda i: (i, 0)),
                pl.BlockSpec((c_pad, image_dim), lambda i: (0, 0)),
                pl.BlockSpec((c_pad, text_dim), lambda i: (0, 0)),
                pl.BlockSpec((1, c_pad), lambda i: (0, 0)),
            ],
            out_specs=pl.BlockSpec((tb, num_classes), lambda i: (i, 0)),
        ),
        compiler_params=pltpu.CompilerParams(
            dimension_semantics=("parallel",),
        ),
    )(image_emb, text_emb, w_img, w_txt, b_packed)


if __name__ == "__main__":
    # Module defaults: image_dim=512, text_dim=768, num_classes=14.
    image_dim, text_dim, num_classes = 512, 768, 14
    batch = 2

    key = jax.random.PRNGKey(0)
    k_img, k_txt, k_w, k_b, k_big = jax.random.split(key, 5)

    image_emb = jax.random.normal(k_img, (batch, image_dim), dtype=jnp.float32)
    text_emb = jax.random.normal(k_txt, (batch, text_dim), dtype=jnp.float32)

    # Deterministic params (mimicking nn.Linear's uniform(-1/sqrt(fan_in), ...)).
    fan_in = image_dim + text_dim
    bound = 1.0 / jnp.sqrt(jnp.float32(fan_in))
    weight = jax.random.uniform(k_w, (num_classes, fan_in), jnp.float32,
                                -bound, bound)
    bias = jax.random.uniform(k_b, (num_classes,), jnp.float32, -bound, bound)

    # One-time packing (class sublane-pad + bf16 cast) -- at "init", not per call.
    params = prepare_classifier_params(weight, bias, image_dim=image_dim)

    # --- small-batch (gridless) path ---
    out = multimodal_classifier(image_emb, text_emb, params)
    out = jax.block_until_ready(out)
    ref = jnp.concatenate([image_emb, text_emb], axis=1) @ weight.T + bias
    assert out.shape == (batch, num_classes)
    # bf16 weights/activations on the MXU -> looser tolerance vs. the f32 reference.
    assert jnp.allclose(out, ref, atol=5e-2, rtol=5e-2)

    # --- batched (row-tiled grid) path ---
    big_b = 512
    k_bi, k_bt = jax.random.split(k_big)
    big_img = jax.random.normal(k_bi, (big_b, image_dim), dtype=jnp.float32)
    big_txt = jax.random.normal(k_bt, (big_b, text_dim), dtype=jnp.float32)
    out_big = multimodal_classifier(big_img, big_txt, params, batch_tile=256)
    out_big = jax.block_until_ready(out_big)
    ref_big = jnp.concatenate([big_img, big_txt], axis=1) @ weight.T + bias
    assert out_big.shape == (big_b, num_classes)
    assert jnp.allclose(out_big, ref_big, atol=5e-2, rtol=5e-2)

    print("KERNEL_OK")
</pallas_src>

<mosaic_0001>
module attributes {stable_mosaic.version = 11 : i64} {
  func.func @_mm_classifier_kernel(%arg0: memref<2x512xf32, #tpu.memory_space<vmem>>, %arg1: memref<2x768xf32, #tpu.memory_space<vmem>>, %arg2: memref<16x512xbf16, #tpu.memory_space<vmem>>, %arg3: memref<16x768xbf16, #tpu.memory_space<vmem>>, %arg4: memref<1x16xf32, #tpu.memory_space<vmem>>, %arg5: memref<2x14xf32, #tpu.memory_space<vmem>>) attributes {dimension_semantics = [], scalar_prefetch = 0 : i64, scratch_operands = 0 : i64, tpu.core_type = #tpu.core_type<tc>} {
    %c0 = arith.constant 0 : index
    %c0_0 = arith.constant 0 : index
    %0 = vector.load %arg0[%c0, %c0_0] : memref<2x512xf32, #tpu.memory_space<vmem>>, vector<2x512xf32>
    %1 = arith.truncf %0 : vector<2x512xf32> to vector<2x512xbf16>
    %c0_1 = arith.constant 0 : index
    %c0_2 = arith.constant 0 : index
    %2 = vector.load %arg1[%c0_1, %c0_2] : memref<2x768xf32, #tpu.memory_space<vmem>>, vector<2x768xf32>
    %3 = arith.truncf %2 : vector<2x768xf32> to vector<2x768xbf16>
    %c0_3 = arith.constant 0 : index
    %c0_4 = arith.constant 0 : index
    %4 = vector.load %arg2[%c0_3, %c0_4] : memref<16x512xbf16, #tpu.memory_space<vmem>>, vector<16x512xbf16>
    %cst = arith.constant dense<0.000000e+00> : vector<2x16xf32>
    %5 = tpu.matmul %1, %4, %cst {dimension_numbers = #tpu.dot_dimension_numbers<[1], [1], [0], [0], [0, 0, 1, 0], [], []>} : vector<2x512xbf16>, vector<16x512xbf16>, vector<2x16xf32> -> vector<2x16xf32>
    %c0_5 = arith.constant 0 : index
    %c0_6 = arith.constant 0 : index
    %6 = vector.load %arg3[%c0_5, %c0_6] : memref<16x768xbf16, #tpu.memory_space<vmem>>, vector<16x768xbf16>
    %cst_7 = arith.constant dense<0.000000e+00> : vector<2x16xf32>
    %7 = tpu.matmul %3, %6, %cst_7 {dimension_numbers = #tpu.dot_dimension_numbers<[1], [1], [0], [0], [0, 0, 1, 0], [], []>} : vector<2x768xbf16>, vector<16x768xbf16>, vector<2x16xf32> -> vector<2x16xf32>
    %8 = arith.addf %5, %7 : vector<2x16xf32>
    %c0_8 = arith.constant 0 : index
    %c0_9 = arith.constant 0 : index
    %9 = vector.load %arg4[%c0_8, %c0_9] : memref<1x16xf32, #tpu.memory_space<vmem>>, vector<1x16xf32>
    %10 = vector.broadcast %9 : vector<1x16xf32> to vector<2x16xf32>
    %11 = arith.addf %8, %10 : vector<2x16xf32>
    %12 = vector.extract_strided_slice %11 {offsets = [0, 0], sizes = [2, 14], strides = [1, 1]} : vector<2x16xf32> to vector<2x14xf32>
    %c0_10 = arith.constant 0 : index
    %c0_11 = arith.constant 0 : index
    %13 = vector.load %arg5[%c0_10, %c0_11] : memref<2x14xf32, #tpu.memory_space<vmem>>, vector<2x14xf32>
    tpu.vector_store %arg5[%c0_10, %c0_11], %12 {strides = array<i32>} : memref<2x14xf32, #tpu.memory_space<vmem>>, vector<2x14xf32>,
    return
  }
}

</mosaic_0001>

<llo_original>
// kernel: tpu_custom_call.1
$region0: #{tpu_custom_call.1}
  #allocation0 [shape = 'u32[]', space=smem, size = 0x4, offset = 0x4, fixed_abs, tag = 'smem constant byte address 0x4 - core index']
  #allocation1 [shape = 'u32[144,128]{1,0:T(1,128)}', space=vmem, size = 0x12000, scoped, tag = 'internal scratch']
  %s0 = inlined_call_operand.hbm [shape: f32[2,512], index: 0, kind: input, shape index: {}]
  %s1 = inlined_call_operand.hbm [shape: f32[2,768], index: 1, kind: input, shape index: {}]
  %s2 = inlined_call_operand.hbm [shape: bf16[16,512], index: 2, kind: input, shape index: {}]
  %s3 = inlined_call_operand.hbm [shape: bf16[16,768], index: 3, kind: input, shape index: {}]
  %s4 = inlined_call_operand.vmem [shape: f32[1,16], index: 4, kind: input, shape index: {}]
  %s5 = inlined_call_operand.hbm [shape: f32[2,14], index: 5, kind: output, shape index: {}]
  %s6 = sld [smem:[#allocation0]]
  $region46: #{tpu_custom_call.1} parent=0
    _
  %s8 = ssub.s32 1, %s6
  %s9 = scalar_select 0, %s8, %s6
  $region1: #{tpu_custom_call.1} parent=0
    #allocation2 [shape = 'u8[4096]{0}', space=vmem, size = 0x1000, scoped, tag = 'input window, operand 0, single buffered']
    #allocation3 [shape = 's32[1]{0}', space=sflag, size = 0x4, scoped, tag = 'scoped memory for tpu_custom_call.1']
    #allocation4 [shape = 's32[1]{0}', space=sflag, size = 0x4, scoped, tag = 'scoped memory for tpu_custom_call.1']
    #allocation5 [shape = 'u8[6144]{0}', space=vmem, size = 0x1800, scoped, tag = 'input window, operand 1, single buffered']
    #allocation6 [shape = 's32[1]{0}', space=sflag, size = 0x4, scoped, tag = 'scoped memory for tpu_custom_call.1']
    #allocation7 [shape = 'u8[16384]{0}', space=vmem, size = 0x4000, scoped, tag = 'input window, operand 2, single buffered']
    #allocation8 [shape = 'u8[24576]{0}', space=vmem, size = 0x6000, scoped, tag = 'input window, operand 3, single buffered']
    #allocation9 [shape = 's32[1]{0}', space=sflag, size = 0x4, scoped, tag = 'scoped memory for tpu_custom_call.1']
    #allocation10 [shape = 'u8[1024]{0}', space=vmem, size = 0x400, scoped, tag = 'output window, operand 0, single buffered']
    %10 = vsyncpa [#allocation3], 0
    %11 = vsyncpa [#allocation6], 0
    %12 = vsyncpa [#allocation9], 0
    %13 = vsyncpa [#allocation4], 0
    // Predicated region
    $region2: #{tpu_custom_call.1} parent=1 // pred_check
      _
    $region3: #{tpu_custom_call.1} parent=1 // pred_check_branch
      %15 = sbr.rel (0) target = $region5
    $region4: #{tpu_custom_call.1} parent=1 // pred_region
      %s17 = ssub.s32 128, 128
      %18 = vsyncadd [#allocation3], %s17
      %s20 = sshll.u32 [#allocation2], 4
      %s21 = int_to_ptr.vmem [resolvable:$true] %s20
      %23 = dma.hbm_to_vmem [thread:$0]  %s0, 128, %s21, [#allocation3]
    $region5: #{tpu_custom_call.1} parent=1 // pred_fallthru
      _
    // Predicated region
    $region6: #{tpu_custom_call.1} parent=1 // pred_check
      _
    $region7: #{tpu_custom_call.1} parent=1 // pred_check_branch
      %25 = sbr.rel (0) target = $region9
    $region8: #{tpu_custom_call.1} parent=1 // pred_region
      %s27 = ssub.s32 192, 192
      %28 = vsyncadd [#allocation6], %s27
      %s30 = sshll.u32 [#allocation5], 4
      %s31 = int_to_ptr.vmem [resolvable:$true] %s30
      %33 = dma.hbm_to_vmem [thread:$0]  %s1, 192, %s31, [#allocation6]
    $region9: #{tpu_custom_call.1} parent=1 // pred_fallthru
      _
    // Predicated region
    $region10: #{tpu_custom_call.1} parent=1 // pred_check
      _
    $region11: #{tpu_custom_call.1} parent=1 // pred_check_branch
      %35 = sbr.rel (0) target = $region13
    $region12: #{tpu_custom_call.1} parent=1 // pred_region
      %s37 = ssub.s32 512, 512
      %38 = vsyncadd [#allocation6], %s37
      %s39 = sshll.u32 [#allocation7], 4
      %s40 = int_to_ptr.vmem [resolvable:$true] %s39
      %45 = dma.hbm_to_vmem [thread:$0]  %s2, 512, %s40, [#allocation6], 256, 256, 16
    $region13: #{tpu_custom_call.1} parent=1 // pred_fallthru
      _
    // Predicated region
    $region14: #{tpu_custom_call.1} parent=1 // pred_check
      _
    $region15: #{tpu_custom_call.1} parent=1 // pred_check_branch
      %47 = sbr.rel (0) target = $region17
    $region16: #{tpu_custom_call.1} parent=1 // pred_region
      %s49 = ssub.s32 768, 768
      %50 = vsyncadd [#allocation9], %s49
      %s51 = sshll.u32 [#allocation8], 4
      %s52 = int_to_ptr.vmem [resolvable:$true] %s51
      %57 = dma.hbm_to_vmem [thread:$0]  %s3, 768, %s52, [#allocation9], 384, 384, 24
    $region17: #{tpu_custom_call.1} parent=1 // pred_fallthru
      _
    // Predicated region
    $region18: #{tpu_custom_call.1} parent=1 // pred_check
      _
    $region19: #{tpu_custom_call.1} parent=1 // pred_check_branch
      %59 = sbr.rel (0) target = $region21
    $region20: #{tpu_custom_call.1} parent=1 // pred_region
      _
    $region21: #{tpu_custom_call.1} parent=1 // pred_fallthru
      _
    // Predicated region
    $region22: #{tpu_custom_call.1} parent=1 // pred_check
      _
    $region23: #{tpu_custom_call.1} parent=1 // pred_check_branch
      %61 = sbr.rel (0) target = $region25
    $region24: #{tpu_custom_call.1} parent=1 // pred_region
      %62 = dma.done [#allocation3], 128
    $region25: #{tpu_custom_call.1} parent=1 // pred_fallthru
      _
    // Predicated region
    $region26: #{tpu_custom_call.1} parent=1 // pred_check
      _
    $region27: #{tpu_custom_call.1} parent=1 // pred_check_branch
      %64 = sbr.rel (0) target = $region29
    $region28: #{tpu_custom_call.1} parent=1 // pred_region
      %65 = dma.done [#allocation6], 192
    $region29: #{tpu_custom_call.1} parent=1 // pred_fallthru
      _
    // Predicated region
    $region30: #{tpu_custom_call.1} parent=1 // pred_check
      _
    $region31: #{tpu_custom_call.1} parent=1 // pred_check_branch
      %67 = sbr.rel (0) target = $region33
    $region32: #{tpu_custom_call.1} parent=1 // pred_region
      %68 = dma.done [#allocation6], 512
    $region33: #{tpu_custom_call.1} parent=1 // pred_fallthru
      _
    // Predicated region
    $region34: #{tpu_custom_call.1} parent=1 // pred_check
      _
    $region35: #{tpu_custom_call.1} parent=1 // pred_check_branch
      %70 = sbr.rel (0) target = $region37
    $region36: #{tpu_custom_call.1} parent=1 // pred_region
      %71 = dma.done [#allocation9], 768
    $region37: #{tpu_custom_call.1} parent=1 // pred_fallthru
      _
    %v73 = vld [vmem:[#allocation2] sm:$0xff]
    %v75 = vcombine.high %v73, %v73
    %v77 = vunpack.c.l.s4 1983009808
    %v78 = vunpack.c.0.s8 %v77
    %v79 = vlaneseq
    %v80 = vshrl.u32 %v79, 7
    %v81 = vsub.s32 %v78, %v80
    %v82 = vrot.slane %v73, %v81
    %v84 = vunpack.c.l.s4 1983009808
    %v85 = vunpack.c.0.s8 %v84
    %v86 = vlaneseq
    %v87 = vshrl.u32 %v86, 7
    %v88 = vsub.s32 %v85, %v87
    %v89 = vrot.slane %v75, %v88
    %v90 = vcombine.high %v82, %v82
    %v91 = vcombine.high %v89, %v89
    %v96 = vpack.c.bf16 %v82, %v82
    %v97 = vpack.c.bf16 %v90, %v90
    %v98 = vpack.c.bf16 %v89, %v89
    %v99 = vpack.c.bf16 %v91, %v91
    %v100 = vld [vmem:[#allocation5] sm:$0xff]
    %v101 = vld [vmem:[#allocation5 + $0x8] sm:$0xf]
    %v104 = vcombine.high %v100, %v100
    %v106 = vunpack.c.l.s4 1983009808
    %v107 = vunpack.c.0.s8 %v106
    %v108 = vlaneseq
    %v109 = vshrl.u32 %v108, 7
    %v110 = vsub.s32 %v107, %v109
    %v111 = vrot.slane %v100, %v110
    %v113 = vunpack.c.l.s4 1983009808
    %v114 = vunpack.c.0.s8 %v113
    %v115 = vlaneseq
    %v116 = vshrl.u32 %v115, 7
    %v117 = vsub.s32 %v114, %v116
    %v118 = vrot.slane %v104, %v117
    %v119 = vcombine.high %v111, %v111
    %v120 = vcombine.high %v118, %v118
    %v122 = vunpack.c.l.s4 1983009808
    %v123 = vunpack.c.0.s8 %v122
    %v124 = vlaneseq
    %v125 = vshrl.u32 %v124, 7
    %v126 = vsub.s32 %v123, %v125
    %v127 = vrot.slane %v101, %v126
    %v128 = vcombine.high %v127, %v127
    %v135 = vpack.c.bf16 %v111, %v111
    %v136 = vpack.c.bf16 %v119, %v119
    %v137 = vpack.c.bf16 %v118, %v118
    %v138 = vpack.c.bf16 %v120, %v120
    %v139 = vpack.c.bf16 %v127, %v127
    %v140 = vpack.c.bf16 %v128, %v128
    %v141 = vld [vmem:[#allocation7] sm:$0xff]
    %v142 = vld [vmem:[#allocation7 + $0x8] sm:$0xff]
    %v143 = vld [vmem:[#allocation7 + $0x10] sm:$0xff]
    %v144 = vld [vmem:[#allocation7 + $0x18] sm:$0xff]
    %v145 = vld [vmem:[#allocation8] sm:$0xff]
    %v146 = vld [vmem:[#allocation8 + $0x8] sm:$0xff]
    %v147 = vld [vmem:[#allocation8 + $0x10] sm:$0xff]
    %v148 = vld [vmem:[#allocation8 + $0x18] sm:$0xff]
    %v149 = vld [vmem:[#allocation8 + $0x20] sm:$0xff]
    %v150 = vld [vmem:[#allocation8 + $0x28] sm:$0xff]
    %v157 = vunpack.c.l.b16 %v145
    %v158 = vunpack.c.h.b16 %v145
    %v159 = vunpack.c.l.b16 %v146
    %v160 = vunpack.c.h.b16 %v146
    %v161 = vunpack.c.l.b16 %v147
    %v162 = vunpack.c.h.b16 %v147
    %v163 = vunpack.c.l.b16 %v148
    %v164 = vunpack.c.h.b16 %v148
    %v165 = vunpack.c.l.b16 %v149
    %v166 = vunpack.c.h.b16 %v149
    %v167 = vunpack.c.l.b16 %v150
    %v168 = vunpack.c.h.b16 %v150
    %v169 = vpack.c.b16 %v163, %v157
    %v170 = vpack.c.b16 %v164, %v158
    %v171 = vpack.c.b16 %v165, %v159
    %v172 = vpack.c.b16 %v166, %v160
    %v173 = vpack.c.b16 %v167, %v161
    %v174 = vpack.c.b16 %v168, %v162
    %181 = vmatprep.subr.bf16.mxu0 %v170
    %182 = vmatpush1.bf16.xpose.msra.mxu0 %v169
    %183 = vmatprep.subr.bf16.mxu0 0
    %184 = vmatpush1.bf16.xpose.msra.mxu0 0
    %185 = vmatprep.subr.bf16.mxu0 0
    %186 = vmatpush1.bf16.xpose.msra.mxu0 0
    %187 = vmatprep.subr.bf16.mxu0 0
    %188 = vmatpush1.bf16.xpose.msra.mxu0 0
    %189 = vmatprep.subr.bf16.mxu0 0
    %190 = vmatpush1.bf16.xpose.msra.mxu0 0
    %191 = vmatprep.subr.bf16.mxu0 0
    %192 = vmatpush1.bf16.xpose.msra.mxu0 0
    %193 = vmatprep.subr.bf16.mxu0 0
    %194 = vmatpush1.bf16.xpose.msra.mxu0 0
    %195 = vmatprep.subr.bf16.mxu0 0
    %196 = vmatpush1.bf16.xpose.msra.mxu0 0
    %197 = vmatprep.subr.bf16.mxu0 0
    %198 = vmatpush1.bf16.xpose.msra.mxu0 0
    %199 = vmatprep.subr.bf16.mxu0 0
    %200 = vmatpush1.bf16.xpose.msra.mxu0 0
    %201 = vmatprep.subr.bf16.mxu0 0
    %202 = vmatpush1.bf16.xpose.msra.mxu0 0
    %203 = vmatprep.subr.bf16.mxu0 0
    %204 = vmatpush1.bf16.xpose.msra.mxu0 0
    %205 = vmatprep.subr.bf16.mxu0 0
    %206 = vmatpush1.bf16.xpose.msra.mxu0 0
    %207 = vmatprep.subr.bf16.mxu0 0
    %208 = vmatpush1.bf16.xpose.msra.mxu0 0
    %209 = vmatprep.subr.bf16.mxu0 0
    %210 = vmatpush1.bf16.xpose.msra.mxu0 0
    %211 = vmatprep.subr.bf16.mxu0 0
    %212 = vmatpush1.bf16.xpose.msra.mxu0 0
    %213 = vmatprep.mubr.bf16.mxu0 %v136
    %214 = vmatmul.mubr.bf16.gmra.mrb[0].mxu0 %v135
    %v215 = vpop.f32.mrb[0].mxu0
    %v216 = vadd.f32 0.0, %v215
    %v217 = vpop.f32.mrb[0].mxu0
    %v218 = vpop.f32.mrb[0].mxu0
    %v219 = vpop.f32.mrb[0].mxu0
    %220 = vdwg.mxu0
    %221 = vmatprep.subr.bf16.mxu0 %v172
    %222 = vmatpush1.bf16.xpose.msra.mxu0 %v171
    %223 = vmatprep.subr.bf16.mxu0 0
    %224 = vmatpush1.bf16.xpose.msra.mxu0 0
    %225 = vmatprep.subr.bf16.mxu0 0
    %226 = vmatpush1.bf16.xpose.msra.mxu0 0
    %227 = vmatprep.subr.bf16.mxu0 0
    %228 = vmatpush1.bf16.xpose.msra.mxu0 0
    %229 = vmatprep.subr.bf16.mxu0 0
    %230 = vmatpush1.bf16.xpose.msra.mxu0 0
    %231 = vmatprep.subr.bf16.mxu0 0
    %232 = vmatpush1.bf16.xpose.msra.mxu0 0
    %233 = vmatprep.subr.bf16.mxu0 0
    %234 = vmatpush1.bf16.xpose.msra.mxu0 0
    %235 = vmatprep.subr.bf16.mxu0 0
    %236 = vmatpush1.bf16.xpose.msra.mxu0 0
    %237 = vmatprep.subr.bf16.mxu0 0
    %238 = vmatpush1.bf16.xpose.msra.mxu0 0
    %239 = vmatprep.subr.bf16.mxu0 0
    %240 = vmatpush1.bf16.xpose.msra.mxu0 0
    %241 = vmatprep.subr.bf16.mxu0 0
    %242 = vmatpush1.bf16.xpose.msra.mxu0 0
    %243 = vmatprep.subr.bf16.mxu0 0
    %244 = vmatpush1.bf16.xpose.msra.mxu0 0
    %245 = vmatprep.subr.bf16.mxu0 0
    %246 = vmatpush1.bf16.xpose.msra.mxu0 0
    %247 = vmatprep.subr.bf16.mxu0 0
    %248 = vmatpush1.bf16.xpose.msra.mxu0 0
    %249 = vmatprep.subr.bf16.mxu0 0
    %250 = vmatpush1.bf16.xpose.msra.mxu0 0
    %251 = vmatprep.subr.bf16.mxu0 0
    %252 = vmatpush1.bf16.xpose.msra.mxu0 0
    %253 = vmatprep.mubr.bf16.mxu0 %v138
    %254 = vmatmul.mubr.bf16.gmra.mrb[0].mxu0 %v137
    %v255 = vpop.f32.mrb[0].mxu0
    %v256 = vadd.f32 %v216, %v255
    %v257 = vpop.f32.mrb[0].mxu0
    %v258 = vpop.f32.mrb[0].mxu0
    %v259 = vpop.f32.mrb[0].mxu0
    %260 = vdwg.mxu0
    %261 = vmatprep.subr.bf16.mxu0 %v174
    %262 = vmatpush1.bf16.xpose.msra.mxu0 %v173
    %263 = vmatprep.subr.bf16.mxu0 0
    %264 = vmatpush1.bf16.xpose.msra.mxu0 0
    %265 = vmatprep.subr.bf16.mxu0 0
    %266 = vmatpush1.bf16.xpose.msra.mxu0 0
    %267 = vmatprep.subr.bf16.mxu0 0
    %268 = vmatpush1.bf16.xpose.msra.mxu0 0
    %269 = vmatprep.subr.bf16.mxu0 0
    %270 = vmatpush1.bf16.xpose.msra.mxu0 0
    %271 = vmatprep.subr.bf16.mxu0 0
    %272 = vmatpush1.bf16.xpose.msra.mxu0 0
    %273 = vmatprep.subr.bf16.mxu0 0
    %274 = vmatpush1.bf16.xpose.msra.mxu0 0
    %275 = vmatprep.subr.bf16.mxu0 0
    %276 = vmatpush1.bf16.xpose.msra.mxu0 0
    %277 = vmatprep.subr.bf16.mxu0 0
    %278 = vmatpush1.bf16.xpose.msra.mxu0 0
    %279 = vmatprep.subr.bf16.mxu0 0
    %280 = vmatpush1.bf16.xpose.msra.mxu0 0
    %281 = vmatprep.subr.bf16.mxu0 0
    %282 = vmatpush1.bf16.xpose.msra.mxu0 0
    %283 = vmatprep.subr.bf16.mxu0 0
    %284 = vmatpush1.bf16.xpose.msra.mxu0 0
    %285 = vmatprep.subr.bf16.mxu0 0
    %286 = vmatpush1.bf16.xpose.msra.mxu0 0
    %287 = vmatprep.subr.bf16.mxu0 0
    %288 = vmatpush1.bf16.xpose.msra.mxu0 0
    %289 = vmatprep.subr.bf16.mxu0 0
    %290 = vmatpush1.bf16.xpose.msra.mxu0 0
    %291 = vmatprep.subr.bf16.mxu0 0
    %292 = vmatpush1.bf16.xpose.msra.mxu0 0
    %293 = vmatprep.mubr.bf16.mxu0 %v140
    %294 = vmatmul.mubr.bf16.gmra.mrb[0].mxu0 %v139
    %v295 = vpop.f32.mrb[0].mxu0
    %v296 = vadd.f32 %v256, %v295
    %v297 = vpop.f32.mrb[0].mxu0
    %v298 = vpop.f32.mrb[0].mxu0
    %v299 = vpop.f32.mrb[0].mxu0
    %300 = vdwg.mxu0
    %v305 = vunpack.c.l.b16 %v141
    %v306 = vunpack.c.h.b16 %v141
    %v307 = vunpack.c.l.b16 %v142
    %v308 = vunpack.c.h.b16 %v142
    %v309 = vunpack.c.l.b16 %v143
    %v310 = vunpack.c.h.b16 %v143
    %v311 = vunpack.c.l.b16 %v144
    %v312 = vunpack.c.h.b16 %v144
    %v313 = vpack.c.b16 %v309, %v305
    %v314 = vpack.c.b16 %v310, %v306
    %v315 = vpack.c.b16 %v311, %v307
    %v316 = vpack.c.b16 %v312, %v308
    %321 = vmatprep.subr.bf16.mxu0 %v314
    %322 = vmatpush1.bf16.xpose.msra.mxu0 %v313
    %323 = vmatprep.subr.bf16.mxu0 0
    %324 = vmatpush1.bf16.xpose.msra.mxu0 0
    %325 = vmatprep.subr.bf16.mxu0 0
    %326 = vmatpush1.bf16.xpose.msra.mxu0 0
    %327 = vmatprep.subr.bf16.mxu0 0
    %328 = vmatpush1.bf16.xpose.msra.mxu0 0
    %329 = vmatprep.subr.bf16.mxu0 0
    %330 = vmatpush1.bf16.xpose.msra.mxu0 0
    %331 = vmatprep.subr.bf16.mxu0 0
    %332 = vmatpush1.bf16.xpose.msra.mxu0 0
    %333 = vmatprep.subr.bf16.mxu0 0
    %334 = vmatpush1.bf16.xpose.msra.mxu0 0
    %335 = vmatprep.subr.bf16.mxu0 0
    %336 = vmatpush1.bf16.xpose.msra.mxu0 0
    %337 = vmatprep.subr.bf16.mxu0 0
    %338 = vmatpush1.bf16.xpose.msra.mxu0 0
    %339 = vmatprep.subr.bf16.mxu0 0
    %340 = vmatpush1.bf16.xpose.msra.mxu0 0
    %341 = vmatprep.subr.bf16.mxu0 0
    %342 = vmatpush1.bf16.xpose.msra.mxu0 0
    %343 = vmatprep.subr.bf16.mxu0 0
    %344 = vmatpush1.bf16.xpose.msra.mxu0 0
    %345 = vmatprep.subr.bf16.mxu0 0
    %346 = vmatpush1.bf16.xpose.msra.mxu0 0
    %347 = vmatprep.subr.bf16.mxu0 0
    %348 = vmatpush1.bf16.xpose.msra.mxu0 0
    %349 = vmatprep.subr.bf16.mxu0 0
    %350 = vmatpush1.bf16.xpose.msra.mxu0 0
    %351 = vmatprep.subr.bf16.mxu0 0
    %352 = vmatpush1.bf16.xpose.msra.mxu0 0
    %353 = vmatprep.mubr.bf16.mxu0 %v97
    %354 = vmatmul.mubr.bf16.gmra.mrb[0].mxu0 %v96
    %v355 = vpop.f32.mrb[0].mxu0
    %v356 = vadd.f32 %v296, %v355
    %v357 = vpop.f32.mrb[0].mxu0
    %v358 = vpop.f32.mrb[0].mxu0
    %v359 = vpop.f32.mrb[0].mxu0
    %360 = vdwg.mxu0
    %361 = vmatprep.subr.bf16.mxu0 %v316
    %362 = vmatpush1.bf16.xpose.msra.mxu0 %v315
    %363 = vmatprep.subr.bf16.mxu0 0
    %364 = vmatpush1.bf16.xpose.msra.mxu0 0
    %365 = vmatprep.subr.bf16.mxu0 0
    %366 = vmatpush1.bf16.xpose.msra.mxu0 0
    %367 = vmatprep.subr.bf16.mxu0 0
    %368 = vmatpush1.bf16.xpose.msra.mxu0 0
    %369 = vmatprep.subr.bf16.mxu0 0
    %370 = vmatpush1.bf16.xpose.msra.mxu0 0
    %371 = vmatprep.subr.bf16.mxu0 0
    %372 = vmatpush1.bf16.xpose.msra.mxu0 0
    %373 = vmatprep.subr.bf16.mxu0 0
    %374 = vmatpush1.bf16.xpose.msra.mxu0 0
    %375 = vmatprep.subr.bf16.mxu0 0
    %376 = vmatpush1.bf16.xpose.msra.mxu0 0
    %377 = vmatprep.subr.bf16.mxu0 0
    %378 = vmatpush1.bf16.xpose.msra.mxu0 0
    %379 = vmatprep.subr.bf16.mxu0 0
    %380 = vmatpush1.bf16.xpose.msra.mxu0 0
    %381 = vmatprep.subr.bf16.mxu0 0
    %382 = vmatpush1.bf16.xpose.msra.mxu0 0
    %383 = vmatprep.subr.bf16.mxu0 0
    %384 = vmatpush1.bf16.xpose.msra.mxu0 0
    %385 = vmatprep.subr.bf16.mxu0 0
    %386 = vmatpush1.bf16.xpose.msra.mxu0 0
    %387 = vmatprep.subr.bf16.mxu0 0
    %388 = vmatpush1.bf16.xpose.msra.mxu0 0
    %389 = vmatprep.subr.bf16.mxu0 0
    %390 = vmatpush1.bf16.xpose.msra.mxu0 0
    %391 = vmatprep.subr.bf16.mxu0 0
    %392 = vmatpush1.bf16.xpose.msra.mxu0 0
    %393 = vmatprep.mubr.bf16.mxu0 %v99
    %394 = vmatmul.mubr.bf16.gmra.mrb[0].mxu0 %v98
    %v395 = vpop.f32.mrb[0].mxu0
    %v396 = vadd.f32 %v356, %v395
    %v397 = vpop.f32.mrb[0].mxu0
    %v398 = vpop.f32.mrb[0].mxu0
    %v399 = vpop.f32.mrb[0].mxu0
    %400 = vdwg.mxu0
    %v401 = vld [vmem:[%s4] sm:$0x1]
    %v403 = vlaneseq
    %v404 = vshrl.u32 %v403, 7
    %v405 = vsub.s32 0, %v404
    %v406 = vrot.slane %v401, %v405
    %v408 = vadd.f32 %v396, %v406
    %vm409 = vcmask 107520
    %410 = vst.msk [vmem:[#allocation10] sm:$0x3] %vm409, %v408
    // Predicated region
    $region38: #{tpu_custom_call.1} parent=1 // pred_check
      _
    $region39: #{tpu_custom_call.1} parent=1 // pred_check_branch
      %412 = sbr.rel (0) target = $region41
    $region40: #{tpu_custom_call.1} parent=1 // pred_region
      %s414 = ssub.s32 32, 32
      %415 = vsyncadd [#allocation4], %s414
      %s417 = sshll.u32 [#allocation10], 4
      %s418 = int_to_ptr.vmem [resolvable:$true] %s417
      %420 = dma.vmem_to_hbm [thread:$0]  %s418, 32, %s5, [#allocation4]
    $region41: #{tpu_custom_call.1} parent=1 // pred_fallthru
      _
    // Predicated region
    $region42: #{tpu_custom_call.1} parent=1 // pred_check
      _
    $region43: #{tpu_custom_call.1} parent=1 // pred_check_branch
      %422 = sbr.rel (0) target = $region45
    $region44: #{tpu_custom_call.1} parent=1 // pred_region
      %423 = dma.done [#allocation4], 32
    $region45: #{tpu_custom_call.1} parent=1 // pred_fallthru
      _
    %424 = vsyncpa [#allocation3], 1
    %425 = vsyncpa [#allocation6], 1
    %426 = vsyncpa [#allocation9], 1
    %427 = vsyncpa [#allocation4], 1

</llo_original>
